<compile_context>
chip_gen: v7x
topology: tpu7x:2x2x1
jax: 0.10.0
libtpu: 0.0.40
codegen_flags: <defaults>
</compile_context>

<pallas_src>
import jax
import jax.numpy as jnp
import numpy as np
from jax.experimental import pallas as pl
from jax.experimental.pallas import tpu as pltpu


def _round_up(x, m):
    return ((x + m - 1) // m) * m


def _cdiv(a, b):
    return -(-a // b)


def mlp_kernel(x_ref, w1_ref, b1_ref, w2_ref, b2_ref, o_ref):
    # hidden = sigmoid(x @ W1 + b1) — bf16 operands, f32 MXU accumulation.
    x = x_ref[...].astype(jnp.bfloat16)
    h = jnp.dot(x, w1_ref[...], preferred_element_type=jnp.float32)
    h = jax.nn.sigmoid(h + b1_ref[...])            # f32 epilogue (EUP)
    # output = sigmoid(h @ W2 + b2)
    o = jnp.dot(h.astype(w2_ref.dtype), w2_ref[...],
                preferred_element_type=jnp.float32)
    o = jax.nn.sigmoid(o + b2_ref[...])
    o_ref[...] = o.astype(o_ref.dtype)


def _pick_batch_tile(batch, tile_b):
    """Return (tile, grid_steps).

    * tile is a multiple of 8 (f32 sublane) or equals the full batch extent.
    * For B >= 32, force >= 2 grid steps so the "parallel" batch axis actually
      shards across v7x's two TensorCores (no effect on v5e/v6e).
    """
    tile_b = max(8, _round_up(int(tile_b), 8))     # harden user-supplied tile
    if batch < 32:
        return batch, 1                            # single full-extent block
    tb = min(tile_b, _round_up(_cdiv(batch, 2), 8))
    return tb, _cdiv(batch, tb)


def mlp_forward(x, w1_bf16, b1_f32, w2_bf16, b2_f32, *, tile_b=1024):
    """sigmoid(sigmoid(x @ W1 + b1) @ W2 + b2) via one Pallas kernel.

    x: (B, n_feature) f32; w1: (n_feature, n_hidden) bf16; b1: (1, n_hidden)
    f32; w2: (n_hidden, n_output) bf16; b2: (1, n_output) f32.
    """
    B, n_feature = x.shape
    n_hidden = w1_bf16.shape[1]
    n_output = w2_bf16.shape[1]

    tb, grid = _pick_batch_tile(B, tile_b)
    # Note: if tb does not divide B, the last batch block is partial; Pallas
    # drops out-of-bounds output rows and rows are independent, so this is
    # safe (garbage OOB input rows never touch valid output rows).

    return pl.pallas_call(
        mlp_kernel,
        out_shape=jax.ShapeDtypeStruct((B, n_output), jnp.float32),
        grid_spec=pltpu.PrefetchScalarGridSpec(
            num_scalar_prefetch=0,
            grid=(grid,),
            in_specs=[
                # x: batch tiles stream through VMEM (auto double-buffered).
                pl.BlockSpec((tb, n_feature), lambda i: (i, 0)),
                # Weights / biases: constant index_map -> VMEM-resident.
                pl.BlockSpec((n_feature, n_hidden), lambda i: (0, 0)),
                pl.BlockSpec((1, n_hidden), lambda i: (0, 0)),
                pl.BlockSpec((n_hidden, n_output), lambda i: (0, 0)),
                pl.BlockSpec((1, n_output), lambda i: (0, 0)),
            ],
            out_specs=pl.BlockSpec((tb, n_output), lambda i: (i, 0)),
        ),
        compiler_params=pltpu.CompilerParams(
            dimension_semantics=("parallel",),   # batch axis: shard across TCs
        ),
    )(x, w1_bf16, b1_f32, w2_bf16, b2_f32)


def make_mlp_forward(w1, b1, w2, b2, *, tile_b=1024):
    """Pre-cast params once (hoisted out of the per-call path); return jitted
    forward(x) so any remaining wrapper ops fuse around the pallas_call."""
    w1b = jnp.asarray(w1, jnp.bfloat16)
    w2b = jnp.asarray(w2, jnp.bfloat16)
    b1f = jnp.asarray(b1, jnp.float32).reshape(1, -1)
    b2f = jnp.asarray(b2, jnp.float32).reshape(1, -1)

    @jax.jit
    def forward(x):
        return mlp_forward(x, w1b, b1f, w2b, b2f, tile_b=tile_b)

    return forward


def init_linear_params(key, fan_in, fan_out):
    # Mimic PyTorch nn.Linear default init: U(-1/sqrt(fan_in), 1/sqrt(fan_in)),
    # deterministic via JAX PRNG; weight returned as (in, out).
    kw, kb = jax.random.split(key)
    bound = 1.0 / np.sqrt(fan_in)
    w = jax.random.uniform(kw, (fan_in, fan_out), jnp.float32, -bound, bound)
    b = jax.random.uniform(kb, (1, fan_out), jnp.float32, -bound, bound)
    return w, b


def reference_forward(x, w1, b1, w2, b2):
    # Same numerics as the kernel: bf16 matmul operands, f32 accumulation.
    xb = x.astype(jnp.bfloat16).astype(jnp.float32)
    w1b = w1.astype(jnp.bfloat16).astype(jnp.float32)
    w2b = w2.astype(jnp.bfloat16).astype(jnp.float32)
    h = jax.nn.sigmoid(xb @ w1b + b1)
    hb = h.astype(jnp.bfloat16).astype(jnp.float32)
    return jax.nn.sigmoid(hb @ w2b + b2)


if __name__ == "__main__":
    n_feature, n_hidden, n_output = 32, 64, 16

    key = jax.random.PRNGKey(0)
    kx, k1, k2, kx2 = jax.random.split(key, 4)

    w1, b1 = init_linear_params(k1, n_feature, n_hidden)
    w2, b2 = init_linear_params(k2, n_hidden, n_output)
    forward = make_mlp_forward(w1, b1, w2, b2)

    # Small batch (single grid step).
    x_small = jax.random.normal(kx, (8, n_feature), jnp.float32)
    out_small = jax.block_until_ready(forward(x_small))
    ref_small = reference_forward(x_small, w1, b1, w2, b2)
    np.testing.assert_allclose(np.asarray(out_small), np.asarray(ref_small),
                               rtol=2e-3, atol=2e-3)

    # Larger batch: exercises the multi-step ("parallel") batch grid path.
    x_big = jax.random.normal(kx2, (64, n_feature), jnp.float32)
    out_big = jax.block_until_ready(forward(x_big))
    ref_big = reference_forward(x_big, w1, b1, w2, b2)
    np.testing.assert_allclose(np.asarray(out_big), np.asarray(ref_big),
                               rtol=2e-3, atol=2e-3)

    print("KERNEL_OK")
</pallas_src>

<mosaic_0001>
module attributes {stable_mosaic.version = 11 : i64} {
  func.func @mlp_kernel(%arg0: i32, %arg1: memref<8x32xf32, #tpu.memory_space<vmem>>, %arg2: memref<32x64xbf16, #tpu.memory_space<vmem>>, %arg3: memref<1x64xf32, #tpu.memory_space<vmem>>, %arg4: memref<64x16xbf16, #tpu.memory_space<vmem>>, %arg5: memref<1x16xf32, #tpu.memory_space<vmem>>, %arg6: memref<8x16xf32, #tpu.memory_space<vmem>>) attributes {dimension_semantics = [#tpu.dimension_semantics<parallel>], iteration_bounds = array<i64: 1>, scalar_prefetch = 0 : i64, scratch_operands = 0 : i64, tpu.core_type = #tpu.core_type<tc>, window_params = [{transform_indices = @transform_0, window_bounds = array<i64: 8, 32>}, {pipeline_mode = #tpu.pipeline_mode<synchronous>, transform_indices = @transform_1, window_bounds = array<i64: 32, 64>}, {pipeline_mode = #tpu.pipeline_mode<synchronous>, transform_indices = @transform_2, window_bounds = array<i64: 1, 64>}, {pipeline_mode = #tpu.pipeline_mode<synchronous>, transform_indices = @transform_3, window_bounds = array<i64: 64, 16>}, {pipeline_mode = #tpu.pipeline_mode<synchronous>, transform_indices = @transform_4, window_bounds = array<i64: 1, 16>}, {transform_indices = @transform_5, window_bounds = array<i64: 8, 16>}]} {
    %c0 = arith.constant 0 : index
    %c0_0 = arith.constant 0 : index
    %0 = vector.load %arg1[%c0, %c0_0] : memref<8x32xf32, #tpu.memory_space<vmem>>, vector<8x32xf32>
    %1 = arith.truncf %0 : vector<8x32xf32> to vector<8x32xbf16>
    %c0_1 = arith.constant 0 : index
    %c0_2 = arith.constant 0 : index
    %2 = vector.load %arg2[%c0_1, %c0_2] : memref<32x64xbf16, #tpu.memory_space<vmem>>, vector<32x64xbf16>
    %cst = arith.constant dense<0.000000e+00> : vector<8x64xf32>
    %3 = tpu.matmul %1, %2, %cst {dimension_numbers = #tpu.dot_dimension_numbers<[1], [0], [0], [1], [0, 0, 1, 1], [], []>} : vector<8x32xbf16>, vector<32x64xbf16>, vector<8x64xf32> -> vector<8x64xf32>
    %c0_3 = arith.constant 0 : index
    %c0_4 = arith.constant 0 : index
    %4 = vector.load %arg3[%c0_3, %c0_4] : memref<1x64xf32, #tpu.memory_space<vmem>>, vector<1x64xf32>
    %5 = vector.broadcast %4 : vector<1x64xf32> to vector<8x64xf32>
    %6 = arith.addf %3, %5 : vector<8x64xf32>
    %7 = arith.negf %6 : vector<8x64xf32>
    %8 = math.exp %7 : vector<8x64xf32>
    %cst_5 = arith.constant 1.000000e+00 : f32
    %9 = vector.broadcast %cst_5 : f32 to vector<8x64xf32>
    %10 = arith.addf %9, %8 : vector<8x64xf32>
    %11 = arith.divf %9, %10 : vector<8x64xf32>
    %12 = arith.truncf %11 : vector<8x64xf32> to vector<8x64xbf16>
    %c0_6 = arith.constant 0 : index
    %c0_7 = arith.constant 0 : index
    %13 = vector.load %arg4[%c0_6, %c0_7] : memref<64x16xbf16, #tpu.memory_space<vmem>>, vector<64x16xbf16>
    %cst_8 = arith.constant dense<0.000000e+00> : vector<8x16xf32>
    %14 = tpu.matmul %12, %13, %cst_8 {dimension_numbers = #tpu.dot_dimension_numbers<[1], [0], [0], [1], [0, 0, 1, 1], [], []>} : vector<8x64xbf16>, vector<64x16xbf16>, vector<8x16xf32> -> vector<8x16xf32>
    %c0_9 = arith.constant 0 : index
    %c0_10 = arith.constant 0 : index
    %15 = vector.load %arg5[%c0_9, %c0_10] : memref<1x16xf32, #tpu.memory_space<vmem>>, vector<1x16xf32>
    %16 = vector.broadcast %15 : vector<1x16xf32> to vector<8x16xf32>
    %17 = arith.addf %14, %16 : vector<8x16xf32>
    %18 = arith.negf %17 : vector<8x16xf32>
    %19 = math.exp %18 : vector<8x16xf32>
    %cst_11 = arith.constant 1.000000e+00 : f32
    %20 = vector.broadcast %cst_11 : f32 to vector<8x16xf32>
    %21 = arith.addf %20, %19 : vector<8x16xf32>
    %22 = arith.divf %20, %21 : vector<8x16xf32>
    %c0_12 = arith.constant 0 : index
    %c0_13 = arith.constant 0 : index
    %23 = vector.load %arg6[%c0_12, %c0_13] : memref<8x16xf32, #tpu.memory_space<vmem>>, vector<8x16xf32>
    tpu.vector_store %arg6[%c0_12, %c0_13], %22 {strides = array<i32>} : memref<8x16xf32, #tpu.memory_space<vmem>>, vector<8x16xf32>,
    return
  }
  func.func @transform_0(%arg0: i32) -> (i32, i32) {
    %c0_i32 = arith.constant 0 : i32
    %c0_i32_0 = arith.constant 0 : i32
    return %arg0, %c0_i32 : i32, i32
  }
  func.func @transform_1(%arg0: i32) -> (i32, i32) {
    %c0_i32 = arith.constant 0 : i32
    %c0_i32_0 = arith.constant 0 : i32
    %c0_i32_1 = arith.constant 0 : i32
    return %c0_i32, %c0_i32_0 : i32, i32
  }
  func.func @transform_2(%arg0: i32) -> (i32, i32) {
    %c0_i32 = arith.constant 0 : i32
    %c0_i32_0 = arith.constant 0 : i32
    %c0_i32_1 = arith.constant 0 : i32
    return %c0_i32, %c0_i32_0 : i32, i32
  }
  func.func @transform_3(%arg0: i32) -> (i32, i32) {
    %c0_i32 = arith.constant 0 : i32
    %c0_i32_0 = arith.constant 0 : i32
    %c0_i32_1 = arith.constant 0 : i32
    return %c0_i32, %c0_i32_0 : i32, i32
  }
  func.func @transform_4(%arg0: i32) -> (i32, i32) {
    %c0_i32 = arith.constant 0 : i32
    %c0_i32_0 = arith.constant 0 : i32
    %c0_i32_1 = arith.constant 0 : i32
    return %c0_i32, %c0_i32_0 : i32, i32
  }
  func.func @transform_5(%arg0: i32) -> (i32, i32) {
    %c0_i32 = arith.constant 0 : i32
    %c0_i32_0 = arith.constant 0 : i32
    return %arg0, %c0_i32 : i32, i32
  }
}

</mosaic_0001>

<llo_original>
// kernel: forward.1
$region0: #{forward.1}
  #allocation0 [shape = 'u32[]', space=smem, size = 0x4, offset = 0x4, fixed_abs, tag = 'smem constant byte address 0x4 - core index']
  #allocation1 [shape = 'u32[144,128]{1,0:T(1,128)}', space=vmem, size = 0x12000, scoped, tag = 'internal scratch']
  %s0 = inlined_call_operand.hbm [shape: f32[8,32], index: 0, kind: input, shape index: {}]
  %s1 = inlined_call_operand.vmem [shape: bf16[32,64], index: 1, kind: input, shape index: {}]
  %s2 = inlined_call_operand.vmem [shape: f32[1,64], index: 2, kind: input, shape index: {}]
  %s3 = inlined_call_operand.hbm [shape: bf16[64,16], index: 3, kind: input, shape index: {}]
  %s4 = inlined_call_operand.vmem [shape: f32[1,16], index: 4, kind: input, shape index: {}]
  %s5 = inlined_call_operand.hbm [shape: f32[8,16], index: 5, kind: output, shape index: {}]
  %s6 = sld [smem:[#allocation0]]
  $region38: #{forward.1} parent=0
    _
  %s8 = ssub.s32 1, %s6
  %s9 = scalar_select 0, %s8, %s6
  $region1: #{forward.1} parent=0
    #allocation2 [shape = 'u8[4096]{0}', space=vmem, size = 0x1000, scoped, tag = 'input window, operand 0, single buffered']
    #allocation3 [shape = 's32[1]{0}', space=sflag, size = 0x4, scoped, tag = 'scoped memory for forward.1']
    #allocation4 [shape = 's32[1]{0}', space=sflag, size = 0x4, scoped, tag = 'scoped memory for forward.1']
    #allocation5 [shape = 'u8[16384]{0}', space=vmem, size = 0x4000, scoped, tag = 'input window, operand 3, single buffered']
    #allocation6 [shape = 's32[1]{0}', space=sflag, size = 0x4, scoped, tag = 'scoped memory for forward.1']
    #allocation7 [shape = 'u8[4096]{0}', space=vmem, size = 0x1000, scoped, tag = 'output window, operand 0, single buffered']
    %10 = vsyncpa [#allocation3], 0
    %11 = vsyncpa [#allocation6], 0
    %12 = vsyncpa [#allocation4], 0
    // Predicated region
    $region2: #{forward.1} parent=1 // pred_check
      _
    $region3: #{forward.1} parent=1 // pred_check_branch
      %14 = sbr.rel (0) target = $region5
    $region4: #{forward.1} parent=1 // pred_region
      %s16 = ssub.s32 128, 128
      %17 = vsyncadd [#allocation3], %s16
      %s19 = sshll.u32 [#allocation2], 4
      %s20 = int_to_ptr.vmem [resolvable:$true] %s19
      %22 = dma.hbm_to_vmem [thread:$0]  %s0, 128, %s20, [#allocation3]
    $region5: #{forward.1} parent=1 // pred_fallthru
      _
    // Predicated region
    $region6: #{forward.1} parent=1 // pred_check
      _
    $region7: #{forward.1} parent=1 // pred_check_branch
      %24 = sbr.rel (0) target = $region9
    $region8: #{forward.1} parent=1 // pred_region
      _
    $region9: #{forward.1} parent=1 // pred_fallthru
      _
    // Predicated region
    $region10: #{forward.1} parent=1 // pred_check
      _
    $region11: #{forward.1} parent=1 // pred_check_branch
      %26 = sbr.rel (0) target = $region13
    $region12: #{forward.1} parent=1 // pred_region
      _
    $region13: #{forward.1} parent=1 // pred_fallthru
      _
    // Predicated region
    $region14: #{forward.1} parent=1 // pred_check
      _
    $region15: #{forward.1} parent=1 // pred_check_branch
      %28 = sbr.rel (0) target = $region17
    $region16: #{forward.1} parent=1 // pred_region
      %s30 = ssub.s32 512, 512
      %31 = vsyncadd [#allocation6], %s30
      %s32 = sshll.u32 [#allocation5], 4
      %s33 = int_to_ptr.vmem [resolvable:$true] %s32
      %38 = dma.hbm_to_vmem [thread:$0]  %s3, 512, %s33, [#allocation6], 64, 64, 4
    $region17: #{forward.1} parent=1 // pred_fallthru
      _
    // Predicated region
    $region18: #{forward.1} parent=1 // pred_check
      _
    $region19: #{forward.1} parent=1 // pred_check_branch
      %40 = sbr.rel (0) target = $region21
    $region20: #{forward.1} parent=1 // pred_region
      _
    $region21: #{forward.1} parent=1 // pred_fallthru
      _
    // Predicated region
    $region22: #{forward.1} parent=1 // pred_check
      _
    $region23: #{forward.1} parent=1 // pred_check_branch
      %42 = sbr.rel (0) target = $region25
    $region24: #{forward.1} parent=1 // pred_region
      %43 = dma.done [#allocation3], 128
    $region25: #{forward.1} parent=1 // pred_fallthru
      _
    // Predicated region
    $region26: #{forward.1} parent=1 // pred_check
      _
    $region27: #{forward.1} parent=1 // pred_check_branch
      %45 = sbr.rel (0) target = $region29
    $region28: #{forward.1} parent=1 // pred_region
      %46 = dma.done [#allocation6], 512
    $region29: #{forward.1} parent=1 // pred_fallthru
      _
    %v48 = vld [vmem:[#allocation2] sm:$0xff]
    %v49 = vpack.c.bf16 %v48, %v48
    %v50 = vld [vmem:[%s1] sm:$0xf]
    %v51 = vld [vmem:[%s1 + $0x4] sm:$0xf]
    %v52 = vld [vmem:[%s1 + $0x8] sm:$0xf]
    %v53 = vld [vmem:[%s1 + $0xc] sm:$0xf]
    %v54 = vld [vmem:[%s2] sm:$0x1]
    %v56 = vlaneseq
    %v57 = vshrl.u32 %v56, 7
    %v58 = vsub.s32 0, %v57
    %v59 = vrot.slane %v54, %v58
    %v65 = vunpack.c.l.b16 %v50
    %v66 = vunpack.c.l.b16 %v51
    %v67 = vunpack.c.l.b16 %v52
    %v68 = vunpack.c.l.b16 %v53
    %v69 = vpack.c.b16 %v66, %v65
    %v70 = vpack.c.b16 %v68, %v67
    %vm73 = vcmask 261120
    %v75 = vsel %vm73, %v49, 0
    %77 = vmatprep.subr.bf16.mxu0 0
    %78 = vmatpush1.bf16.msra.mxu0 %v69
    %79 = vmatprep.subr.bf16.mxu0 0
    %80 = vmatpush1.bf16.msra.mxu0 %v70
    %81 = vmatprep.subr.bf16.mxu0 0
    %82 = vmatpush1.bf16.msra.mxu0 0
    %83 = vmatprep.subr.bf16.mxu0 0
    %84 = vmatpush1.bf16.msra.mxu0 0
    %85 = vmatprep.subr.bf16.mxu0 0
    %86 = vmatpush1.bf16.msra.mxu0 0
    %87 = vmatprep.subr.bf16.mxu0 0
    %88 = vmatpush1.bf16.msra.mxu0 0
    %89 = vmatprep.subr.bf16.mxu0 0
    %90 = vmatpush1.bf16.msra.mxu0 0
    %91 = vmatprep.subr.bf16.mxu0 0
    %92 = vmatpush1.bf16.msra.mxu0 0
    %93 = vmatprep.subr.bf16.mxu0 0
    %94 = vmatpush1.bf16.msra.mxu0 0
    %95 = vmatprep.subr.bf16.mxu0 0
    %96 = vmatpush1.bf16.msra.mxu0 0
    %97 = vmatprep.subr.bf16.mxu0 0
    %98 = vmatpush1.bf16.msra.mxu0 0
    %99 = vmatprep.subr.bf16.mxu0 0
    %100 = vmatpush1.bf16.msra.mxu0 0
    %101 = vmatprep.subr.bf16.mxu0 0
    %102 = vmatpush1.bf16.msra.mxu0 0
    %103 = vmatprep.subr.bf16.mxu0 0
    %104 = vmatpush1.bf16.msra.mxu0 0
    %105 = vmatprep.subr.bf16.mxu0 0
    %106 = vmatpush1.bf16.msra.mxu0 0
    %107 = vmatprep.subr.bf16.mxu0 0
    %108 = vmatpush1.bf16.msra.mxu0 0
    %109 = vmatprep.mubr.bf16.mxu0 0
    %110 = vmatmul.mubr.bf16.gmra.mrb[0].mxu0 %v75
    %v111 = vpop.f32.mrb[0].mxu0
    %v112 = vadd.f32 %v59, %v111
    %v113 = vpop.f32.mrb[0].mxu0
    %v114 = vpop.f32.mrb[0].mxu0
    %v115 = vpop.f32.mrb[0].mxu0
    %116 = vdwg.mxu0
    %v117 = vxor.u32 %v112, 2147483648
    %v118 = vmul.f32 %v117, 1.442695
    %v119 = vpow.pop %v118
    %v120 = vadd.f32 %v119, 1.0
    %v121 = vrcp.pop %v120
    %v122 = vmul.f32 1.0, %v121
    %v123 = vpack.c.bf16 %v122, %v122
    %v124 = vld [vmem:[#allocation5] sm:$0xf]
    %v125 = vld [vmem:[#allocation5 + $0x4] sm:$0xf]
    %v126 = vld [vmem:[#allocation5 + $0x8] sm:$0xf]
    %v127 = vld [vmem:[#allocation5 + $0xc] sm:$0xf]
    %v128 = vld [vmem:[#allocation5 + $0x10] sm:$0xf]
    %v129 = vld [vmem:[#allocation5 + $0x14] sm:$0xf]
    %v130 = vld [vmem:[#allocation5 + $0x18] sm:$0xf]
    %v131 = vld [vmem:[#allocation5 + $0x1c] sm:$0xf]
    %v132 = vld [vmem:[%s4] sm:$0x1]
    %v134 = vlaneseq
    %v135 = vshrl.u32 %v134, 7
    %v136 = vsub.s32 0, %v135
    %v137 = vrot.slane %v132, %v136
    %v147 = vunpack.c.l.b16 %v124
    %v148 = vunpack.c.l.b16 %v125
    %v149 = vunpack.c.l.b16 %v126
    %v150 = vunpack.c.l.b16 %v127
    %v151 = vunpack.c.l.b16 %v128
    %v152 = vunpack.c.l.b16 %v129
    %v153 = vunpack.c.l.b16 %v130
    %v154 = vunpack.c.l.b16 %v131
    %v155 = vpack.c.b16 %v148, %v147
    %v156 = vpack.c.b16 %v150, %v149
    %v157 = vpack.c.b16 %v152, %v151
    %v158 = vpack.c.b16 %v154, %v153
    %vm163 = vcmask 523264
    %v165 = vsel %vm163, %v123, 0
    %167 = vmatprep.subr.bf16.mxu0 0
    %168 = vmatpush1.bf16.msra.mxu0 %v155
    %169 = vmatprep.subr.bf16.mxu0 0
    %170 = vmatpush1.bf16.msra.mxu0 %v156
    %171 = vmatprep.subr.bf16.mxu0 0
    %172 = vmatpush1.bf16.msra.mxu0 %v157
    %173 = vmatprep.subr.bf16.mxu0 0
    %174 = vmatpush1.bf16.msra.mxu0 %v158
    %175 = vmatprep.subr.bf16.mxu0 0
    %176 = vmatpush1.bf16.msra.mxu0 0
    %177 = vmatprep.subr.bf16.mxu0 0
    %178 = vmatpush1.bf16.msra.mxu0 0
    %179 = vmatprep.subr.bf16.mxu0 0
    %180 = vmatpush1.bf16.msra.mxu0 0
    %181 = vmatprep.subr.bf16.mxu0 0
    %182 = vmatpush1.bf16.msra.mxu0 0
    %183 = vmatprep.subr.bf16.mxu0 0
    %184 = vmatpush1.bf16.msra.mxu0 0
    %185 = vmatprep.subr.bf16.mxu0 0
    %186 = vmatpush1.bf16.msra.mxu0 0
    %187 = vmatprep.subr.bf16.mxu0 0
    %188 = vmatpush1.bf16.msra.mxu0 0
    %189 = vmatprep.subr.bf16.mxu0 0
    %190 = vmatpush1.bf16.msra.mxu0 0
    %191 = vmatprep.subr.bf16.mxu0 0
    %192 = vmatpush1.bf16.msra.mxu0 0
    %193 = vmatprep.subr.bf16.mxu0 0
    %194 = vmatpush1.bf16.msra.mxu0 0
    %195 = vmatprep.subr.bf16.mxu0 0
    %196 = vmatpush1.bf16.msra.mxu0 0
    %197 = vmatprep.subr.bf16.mxu0 0
    %198 = vmatpush1.bf16.msra.mxu0 0
    %199 = vmatprep.mubr.bf16.mxu0 0
    %200 = vmatmul.mubr.bf16.gmra.mrb[0].mxu0 %v165
    %v201 = vpop.f32.mrb[0].mxu0
    %v202 = vadd.f32 %v137, %v201
    %v203 = vpop.f32.mrb[0].mxu0
    %v204 = vpop.f32.mrb[0].mxu0
    %v205 = vpop.f32.mrb[0].mxu0
    %206 = vdwg.mxu0
    %v207 = vxor.u32 %v202, 2147483648
    %v208 = vmul.f32 %v207, 1.442695
    %v209 = vpow.pop %v208
    %v210 = vadd.f32 %v209, 1.0
    %v211 = vrcp.pop %v210
    %v212 = vmul.f32 1.0, %v211
    %vm213 = vcmask 130048
    %214 = vst.msk [vmem:[#allocation7] sm:$0xff] %vm213, %v212
    // Predicated region
    $region30: #{forward.1} parent=1 // pred_check
      _
    $region31: #{forward.1} parent=1 // pred_check_branch
      %216 = sbr.rel (0) target = $region33
    $region32: #{forward.1} parent=1 // pred_region
      %s218 = ssub.s32 128, 128
      %219 = vsyncadd [#allocation4], %s218
      %s221 = sshll.u32 [#allocation7], 4
      %s222 = int_to_ptr.vmem [resolvable:$true] %s221
      %224 = dma.vmem_to_hbm [thread:$0]  %s222, 128, %s5, [#allocation4]
    $region33: #{forward.1} parent=1 // pred_fallthru
      _
    // Predicated region
    $region34: #{forward.1} parent=1 // pred_check
      _
    $region35: #{forward.1} parent=1 // pred_check_branch
      %226 = sbr.rel (0) target = $region37
    $region36: #{forward.1} parent=1 // pred_region
      %227 = dma.done [#allocation4], 128
    $region37: #{forward.1} parent=1 // pred_fallthru
      _
    %228 = vsyncpa [#allocation3], 1
    %229 = vsyncpa [#allocation6], 1
    %230 = vsyncpa [#allocation4], 1

</llo_original>
